<compile_context>
chip_gen: v6e
topology: v6e:2x2x1
jax: 0.10.0
libtpu: 0.0.40
codegen_flags: <defaults>
</compile_context>

<pallas_src>
import functools

import jax
import jax.numpy as jnp
from jax.experimental import pallas as pl
from jax.experimental.pallas import tpu as pltpu


# ----------------------------- small helpers --------------------------------

def _round_up(v, m):
    return (v + m - 1) // m * m


def make_zsign(n_wires):
    """(2^n, n) matrix of PauliZ eigenvalues: +1 if wire-bit is 0 else -1.

    Wire 0 is the most-significant bit of the flattened statevector index."""
    ks = jnp.arange(2 ** n_wires)
    bits = (ks[:, None] >> (n_wires - 1 - jnp.arange(n_wires))[None, :]) & 1
    return (1 - 2 * bits).astype(jnp.float32)


# -------------------- gate-level statevector math (plain JAX) ---------------
# Used (a) to pre-fold the weight unitaries outside the kernel and (b) for a
# gate-by-gate reference implementation used as a correctness check.

def _bit(n_wires, wire):
    shape = [1] * n_wires
    shape[wire] = 2
    return jnp.arange(2).reshape(shape)


def _apply_1q(state, U, wire, n_wires):
    state = jnp.moveaxis(state, wire + 1, -1)
    state = jnp.einsum("...j,ij->...i", state, U)
    return jnp.moveaxis(state, -1, wire + 1)


def _apply_rz_batched(state, theta, wire, n_wires):
    # RZ(theta) = diag(e^{-i t/2}, e^{+i t/2}); theta is per-batch (b,).
    bit = _bit(n_wires, wire).astype(jnp.float32)
    ang = 0.5 * theta.reshape((-1,) + (1,) * n_wires) * (2.0 * bit - 1.0)[None]
    return state * jnp.exp(1j * ang).astype(state.dtype)


def _apply_cz(state, w1, w2, n_wires):
    sign = 1.0 - 2.0 * (_bit(n_wires, w1) * _bit(n_wires, w2)).astype(jnp.float32)
    return state * sign[None].astype(state.dtype)


def _rot_matrix(phi, theta, omega):
    # PennyLane Rot(phi, theta, omega) = RZ(omega) RY(theta) RZ(phi)
    c = jnp.cos(theta / 2.0).astype(jnp.complex64)
    s = jnp.sin(theta / 2.0).astype(jnp.complex64)
    ep = jnp.exp(-0.5j * (phi + omega)).astype(jnp.complex64)
    em = jnp.exp(-0.5j * (phi - omega)).astype(jnp.complex64)
    row0 = jnp.stack([ep * c, -jnp.conj(em) * s])
    row1 = jnp.stack([em * s, jnp.conj(ep) * c])
    return jnp.stack([row0, row1])


def _apply_sel_block(state, w_layer, n_wires):
    """One StronglyEntanglingLayers block (weights (2, n_wires, 3), CZ
    imprimitive, PennyLane default ranges) on a batched statevector."""
    n_sub = w_layer.shape[0]
    for l in range(n_sub):
        for j in range(n_wires):
            U = _rot_matrix(w_layer[l, j, 0], w_layer[l, j, 1], w_layer[l, j, 2])
            state = _apply_1q(state, U, j, n_wires)
        if n_wires > 1:
            r = (l % (n_wires - 1)) + 1
            for j in range(n_wires):
                state = _apply_cz(state, j, (j + r) % n_wires, n_wires)
    return state


def fold_sel_unitaries(weights1, n_wires):
    """weights1: (N, L, 2, n_wires, 3).  Returns (N*L, 2^n, 2^n) complex64.

    Entry k = U^T of that block, so a row-vector state transforms as
    psi_row_new = psi_row @ U^T."""
    n_blocks, n_layers = weights1.shape[0], weights1.shape[1]
    dim = 2 ** n_wires
    mats = []
    for n in range(n_blocks):
        for i in range(n_layers):
            state = jnp.eye(dim, dtype=jnp.complex64).reshape((dim,) + (2,) * n_wires)
            state = _apply_sel_block(state, weights1[n, i], n_wires)
            mats.append(state.reshape(dim, dim))  # row b = U|b>  =>  matrix = U^T
    return jnp.stack(mats, axis=0)


# ------------------------------ fused Pallas kernel --------------------------

def _qiddm_fused_kernel(x_ref, p0_ref, p0b_ref, zh2_ref, ublk_ref, zw2_ref,
                        bu_ref, o_ref, *, n_blocks, spectrum_layer, dim_state):
    f32 = jnp.float32
    two_dim = 2 * dim_state

    x = x_ref[...]                                       # (tile_b, din_pad)

    # Signed 32-wide phase for block 0: ph = [-phi | phi] (so cos(ph)=[c|c],
    # sin(ph)=[-s|s]).  linear_down is pre-folded into p0 / p0b.
    ph = jnp.dot(x, p0_ref[...], preferred_element_type=f32) + p0b_ref[...]

    sq = None
    for n in range(n_blocks):
        # Hoisted out of the spectrum loop: the RZ angles only change per block.
        c2 = jnp.cos(ph)                                 # [cos | cos]
        s2 = jnp.sin(ph)                                 # [-sin | sin]

        base = n * spectrum_layer * two_dim
        # First spectrum layer: state is |0...0>; after RZ it has a single
        # nonzero amplitude cos(phi0) + i sin(phi0), so applying the unitary
        # is a rank-1 broadcast of two rows of U_blk (VPU only, no MXU op).
        row_re = ublk_ref[pl.ds(base, 1), :]                       # (1, 2d)
        row_im = ublk_ref[pl.ds(base + dim_state, 1), :]           # (1, 2d)
        st = (c2[:, 0:1] * row_re
              + s2[:, dim_state:dim_state + 1] * row_im)           # (tile_b, 2d)

        for i in range(1, spectrum_layer):
            # RZ phase rotation in block-real form: [re|im] -> [re*c - im*s |
            # im*c + re*s] using the half-swapped state and signed sin.
            st_swap = jnp.concatenate(
                [st[:, dim_state:], st[:, :dim_state]], axis=1)
            st_d = st * c2 + st_swap * s2
            # One block-real matmul per layer: U_blk = [[ur, ui], [-ui, ur]],
            # sublane-stacked; static, 8-aligned row slice.
            ub = ublk_ref[pl.ds((n * spectrum_layer + i) * two_dim, two_dim), :]
            st = jnp.dot(st_d, ub, preferred_element_type=f32)

        sq = st * st                                     # [re^2 | im^2]
        if n + 1 < n_blocks:
            # Next block's signed phase: probs @ (zsign @ half_sign), with the
            # [re^2|im^2] -> probs sum folded into the doubled matrix zh2.
            ph = jnp.dot(sq, zh2_ref[...], preferred_element_type=f32)

    # linear_up folded through the PauliZ expectations: out = probs @ (Z@Wup)+b
    out = jnp.dot(sq, zw2_ref[...], preferred_element_type=f32) + bu_ref[...]
    o_ref[...] = out.astype(o_ref.dtype)


# ------------------------------ model wrappers --------------------------------

def init_params(key, input_dim, hidden_features, spectrum_layer, N):
    k1, k2, k3, k4, k5 = jax.random.split(key, 5)
    lim_d = 1.0 / jnp.sqrt(input_dim)
    lim_u = 1.0 / jnp.sqrt(hidden_features)
    w_down = jax.random.uniform(k1, (hidden_features, input_dim), jnp.float32, -lim_d, lim_d)
    b_down = jax.random.uniform(k2, (hidden_features,), jnp.float32, -lim_d, lim_d)
    w_up = jax.random.uniform(k3, (input_dim, hidden_features), jnp.float32, -lim_u, lim_u)
    b_up = jax.random.uniform(k4, (input_dim,), jnp.float32, -lim_u, lim_u)
    weights1 = 0.4 * jax.random.normal(
        k5, (N, spectrum_layer, 2, hidden_features, 3), jnp.float32)
    return {
        "w_down_t": w_down.T,   # (input_dim, hidden)
        "b_down": b_down,
        "w_up_t": w_up.T,       # (hidden, input_dim)
        "b_up": b_up,
        "weights1": weights1,
    }


def prepare_params(params, *, hidden_features):
    """One-time (weight-only) preparation: fold circuit unitaries into
    block-real matrices and pre-fold all width-n projections (linear_down,
    Z-expectation, linear_up) so no 4-lane matmul ever runs in the kernel."""
    n_wires = hidden_features
    dim = 2 ** n_wires
    two_dim = 2 * dim
    input_dim = params["w_down_t"].shape[0]
    din_pad = _round_up(max(input_dim, 128), 128)
    dout_pad = _round_up(max(input_dim, 128), 128)

    zsign = make_zsign(n_wires)                       # (2^n, n)
    half_sign = (-0.5) * zsign.T                      # (n, 2^n): RZ diag angles

    # Block-0 phase:  x @ (W_down^T @ half_sign) + (b_down @ half_sign)
    p0 = params["w_down_t"].astype(jnp.float32) @ half_sign        # (Din, 2^n)
    p0 = jnp.pad(p0, ((0, din_pad - input_dim), (0, 0)))
    p0_s = jnp.concatenate([-p0, p0], axis=1)                      # (din_pad, 2*2^n)
    p0b = (params["b_down"].astype(jnp.float32) @ half_sign).reshape(1, dim)
    p0b_s = jnp.concatenate([-p0b, p0b], axis=1)                   # (1, 2*2^n)

    # Inter-block phase: probs @ (zsign @ half_sign); doubled over [re^2|im^2].
    zh = zsign @ half_sign                                         # (2^n, 2^n)
    zh_s = jnp.concatenate([-zh, zh], axis=1)                      # (2^n, 2*2^n)
    zh2 = jnp.concatenate([zh_s, zh_s], axis=0)                    # (2*2^n, 2*2^n)

    # Output: probs @ (zsign @ W_up^T) + b_up; doubled over [re^2|im^2].
    zw = zsign @ params["w_up_t"].astype(jnp.float32)              # (2^n, Din)
    zw = jnp.pad(zw, ((0, 0), (0, dout_pad - input_dim)))
    zw2 = jnp.concatenate([zw, zw], axis=0)                        # (2*2^n, dout_pad)
    bu = jnp.pad(params["b_up"].astype(jnp.float32).reshape(1, -1),
                 ((0, 0), (0, dout_pad - input_dim)))

    # Pre-folded StronglyEntanglingLayers blocks as block-real matrices,
    # sublane-stacked: rows [k*2d, (k+1)*2d) = [[ur, ui], [-ui, ur]] of block k.
    u_t = fold_sel_unitaries(params["weights1"], n_wires)          # (N*L, d, d) c64
    ur = jnp.real(u_t).astype(jnp.float32)
    ui = jnp.imag(u_t).astype(jnp.float32)
    top = jnp.concatenate([ur, ui], axis=2)
    bot = jnp.concatenate([-ui, ur], axis=2)
    ublk = jnp.concatenate([top, bot], axis=1).reshape(-1, two_dim)  # (N*L*2d, 2d)

    return {
        "p0_s": p0_s, "p0b_s": p0b_s, "zh2": zh2,
        "ublk": ublk, "zw2": zw2, "b_up_pad": bu,
    }


@functools.partial(jax.jit, static_argnames=("hidden_features", "spectrum_layer", "N"))
def qiddm_forward(x, prep, *, hidden_features, spectrum_layer, N):
    b, c, h, w = x.shape
    input_dim = c * h * w
    dim_state = 2 ** hidden_features
    two_dim = 2 * dim_state
    nl = N * spectrum_layer

    din_pad = prep["p0_s"].shape[0]
    dout_pad = prep["zw2"].shape[1]

    # Batch tiling: one sublane-dense tile for small batches; 256-row tiles on
    # a "parallel" grid axis for large batches (sharded across v7x's 2 TCs,
    # harmless no-op on v5e/v6e).
    if b <= 256:
        tile_b = _round_up(max(b, 8), 8)
    else:
        tile_b = 256
    bp = _round_up(b, tile_b)

    x_flat = x.reshape(b, -1).astype(jnp.float32)
    x_pad = jnp.pad(x_flat, ((0, bp - b), (0, din_pad - input_dim)))

    kernel = functools.partial(_qiddm_fused_kernel, n_blocks=N,
                               spectrum_layer=spectrum_layer, dim_state=dim_state)

    out_pad = pl.pallas_call(
        kernel,
        out_shape=jax.ShapeDtypeStruct((bp, dout_pad), jnp.float32),
        grid=(bp // tile_b,),
        in_specs=[
            pl.BlockSpec((tile_b, din_pad), lambda m: (m, 0)),
            pl.BlockSpec((din_pad, two_dim), lambda m: (0, 0)),
            pl.BlockSpec((1, two_dim), lambda m: (0, 0)),
            pl.BlockSpec((two_dim, two_dim), lambda m: (0, 0)),
            pl.BlockSpec((nl * two_dim, two_dim), lambda m: (0, 0)),
            pl.BlockSpec((two_dim, dout_pad), lambda m: (0, 0)),
            pl.BlockSpec((1, dout_pad), lambda m: (0, 0)),
        ],
        out_specs=pl.BlockSpec((tile_b, dout_pad), lambda m: (m, 0)),
        compiler_params=pltpu.CompilerParams(dimension_semantics=("parallel",)),
    )(x_pad, prep["p0_s"], prep["p0b_s"], prep["zh2"], prep["ublk"],
      prep["zw2"], prep["b_up_pad"])

    return out_pad[:b, :input_dim].reshape(b, c, h, w)


# ------------------- pure-JAX gate-by-gate reference (for checking) ----------

def _reference_forward(x, params, *, hidden_features, spectrum_layer, N):
    b, c, h, w = x.shape
    n_wires = hidden_features
    x_flat = x.reshape(b, -1).astype(jnp.float32)
    x_red = x_flat @ params["w_down_t"] + params["b_down"]
    zsign = make_zsign(n_wires)
    for n in range(N):
        state = jnp.zeros((b,) + (2,) * n_wires, dtype=jnp.complex64)
        state = state.at[(slice(None),) + (0,) * n_wires].set(1.0 + 0.0j)
        for i in range(spectrum_layer):
            for j in range(n_wires):
                state = _apply_rz_batched(state, x_red[:, j], j, n_wires)
            state = _apply_sel_block(state, params["weights1"][n, i], n_wires)
        probs = (jnp.abs(state.reshape(b, -1)) ** 2).astype(jnp.float32)
        x_red = probs @ zsign
    out = x_red @ params["w_up_t"] + params["b_up"]
    return out.reshape(b, c, h, w)


# ------------------------------------ main ------------------------------------

if __name__ == "__main__":
    # Small shapes: b=2, c=1, 8x8 images -> input_dim=64, hidden=4 qubits.
    b, c, hgt, wid = 2, 1, 8, 8
    input_dim = c * hgt * wid
    hidden_features = 4
    spectrum_layer = 2
    N = 2

    key = jax.random.PRNGKey(0)
    kx, kp = jax.random.split(key)
    x = jax.random.normal(kx, (b, c, hgt, wid), jnp.float32)
    params = init_params(kp, input_dim, hidden_features, spectrum_layer, N)
    prep = prepare_params(params, hidden_features=hidden_features)

    out = qiddm_forward(x, prep, hidden_features=hidden_features,
                        spectrum_layer=spectrum_layer, N=N)
    out = jax.block_until_ready(out)
    assert out.shape == (b, c, hgt, wid)
    assert out.dtype == jnp.float32
    assert bool(jnp.all(jnp.isfinite(out)))

    # Gate-by-gate pure-JAX reference (loose tolerance: MXU default f32
    # precision differs between the Pallas and XLA matmul paths).
    ref = jax.block_until_ready(
        _reference_forward(x, params, hidden_features=hidden_features,
                           spectrum_layer=spectrum_layer, N=N))
    max_err = float(jnp.max(jnp.abs(out - ref)))
    assert max_err < 5e-2, f"mismatch vs reference: max_err={max_err}"

    print("KERNEL_OK")
</pallas_src>

<mosaic_0001>
module attributes {stable_mosaic.version = 11 : i64} {
  func.func @_qiddm_fused_kernel(%arg0: i32, %arg1: memref<8x128xf32, #tpu.memory_space<vmem>>, %arg2: memref<128x32xf32, #tpu.memory_space<vmem>>, %arg3: memref<1x32xf32, #tpu.memory_space<vmem>>, %arg4: memref<32x32xf32, #tpu.memory_space<vmem>>, %arg5: memref<128x32xf32, #tpu.memory_space<vmem>>, %arg6: memref<32x128xf32, #tpu.memory_space<vmem>>, %arg7: memref<1x128xf32, #tpu.memory_space<vmem>>, %arg8: memref<8x128xf32, #tpu.memory_space<vmem>>) attributes {dimension_semantics = [#tpu.dimension_semantics<parallel>], iteration_bounds = array<i64: 1>, scalar_prefetch = 0 : i64, scratch_operands = 0 : i64, tpu.core_type = #tpu.core_type<tc>, window_params = [{transform_indices = @transform_0, window_bounds = array<i64: 8, 128>}, {pipeline_mode = #tpu.pipeline_mode<synchronous>, transform_indices = @transform_1, window_bounds = array<i64: 128, 32>}, {pipeline_mode = #tpu.pipeline_mode<synchronous>, transform_indices = @transform_2, window_bounds = array<i64: 1, 32>}, {pipeline_mode = #tpu.pipeline_mode<synchronous>, transform_indices = @transform_3, window_bounds = array<i64: 32, 32>}, {pipeline_mode = #tpu.pipeline_mode<synchronous>, transform_indices = @transform_4, window_bounds = array<i64: 128, 32>}, {pipeline_mode = #tpu.pipeline_mode<synchronous>, transform_indices = @transform_5, window_bounds = array<i64: 32, 128>}, {pipeline_mode = #tpu.pipeline_mode<synchronous>, transform_indices = @transform_6, window_bounds = array<i64: 1, 128>}, {transform_indices = @transform_7, window_bounds = array<i64: 8, 128>}]} {
    %c0 = arith.constant 0 : index
    %c0_0 = arith.constant 0 : index
    %0 = vector.load %arg1[%c0, %c0_0] : memref<8x128xf32, #tpu.memory_space<vmem>>, vector<8x128xf32>
    %c0_1 = arith.constant 0 : index
    %c0_2 = arith.constant 0 : index
    %1 = vector.load %arg2[%c0_1, %c0_2] : memref<128x32xf32, #tpu.memory_space<vmem>>, vector<128x32xf32>
    %cst = arith.constant dense<0.000000e+00> : vector<8x32xf32>
    %2 = tpu.matmul %0, %1, %cst {dimension_numbers = #tpu.dot_dimension_numbers<[1], [0], [0], [1], [0, 0, 1, 1], [], []>} : vector<8x128xf32>, vector<128x32xf32>, vector<8x32xf32> -> vector<8x32xf32>
    %c0_3 = arith.constant 0 : index
    %c0_4 = arith.constant 0 : index
    %3 = vector.load %arg3[%c0_3, %c0_4] : memref<1x32xf32, #tpu.memory_space<vmem>>, vector<1x32xf32>
    %4 = vector.broadcast %3 : vector<1x32xf32> to vector<8x32xf32>
    %5 = arith.addf %2, %4 : vector<8x32xf32>
    %6 = math.cos %5 : vector<8x32xf32>
    %7 = math.sin %5 : vector<8x32xf32>
    %c0_5 = arith.constant 0 : index
    %c0_6 = arith.constant 0 : index
    %8 = vector.load %arg5[%c0_5, %c0_6] : memref<128x32xf32, #tpu.memory_space<vmem>>, vector<1x32xf32>
    %c16 = arith.constant 16 : index
    %c0_7 = arith.constant 0 : index
    %9 = vector.load %arg5[%c16, %c0_7] : memref<128x32xf32, #tpu.memory_space<vmem>>, vector<1x32xf32>
    %10 = vector.extract_strided_slice %6 {offsets = [0, 0], sizes = [8, 1], strides = [1, 1]} : vector<8x32xf32> to vector<8x1xf32>
    %11 = vector.broadcast %10 : vector<8x1xf32> to vector<8x32xf32>
    %12 = vector.broadcast %8 : vector<1x32xf32> to vector<8x32xf32>
    %13 = arith.mulf %11, %12 : vector<8x32xf32>
    %14 = vector.extract_strided_slice %7 {offsets = [0, 16], sizes = [8, 1], strides = [1, 1]} : vector<8x32xf32> to vector<8x1xf32>
    %15 = vector.broadcast %14 : vector<8x1xf32> to vector<8x32xf32>
    %16 = vector.broadcast %9 : vector<1x32xf32> to vector<8x32xf32>
    %17 = arith.mulf %15, %16 : vector<8x32xf32>
    %18 = arith.addf %13, %17 : vector<8x32xf32>
    %19 = vector.extract_strided_slice %18 {offsets = [0, 16], sizes = [8, 16], strides = [1, 1]} : vector<8x32xf32> to vector<8x16xf32>
    %20 = vector.extract_strided_slice %18 {offsets = [0, 0], sizes = [8, 16], strides = [1, 1]} : vector<8x32xf32> to vector<8x16xf32>
    %21 = tpu.concatenate %19, %20 in 1 : vector<8x16xf32>, vector<8x16xf32> -> vector<8x32xf32>
    %22 = arith.mulf %18, %6 : vector<8x32xf32>
    %23 = arith.mulf %21, %7 : vector<8x32xf32>
    %24 = arith.addf %22, %23 : vector<8x32xf32>
    %c32 = arith.constant 32 : index
    %c0_8 = arith.constant 0 : index
    %25 = vector.load %arg5[%c32, %c0_8] : memref<128x32xf32, #tpu.memory_space<vmem>>, vector<32x32xf32>
    %cst_9 = arith.constant dense<0.000000e+00> : vector<8x32xf32>
    %26 = tpu.matmul %24, %25, %cst_9 {dimension_numbers = #tpu.dot_dimension_numbers<[1], [0], [0], [1], [0, 0, 1, 1], [], []>} : vector<8x32xf32>, vector<32x32xf32>, vector<8x32xf32> -> vector<8x32xf32>
    %27 = arith.mulf %26, %26 : vector<8x32xf32>
    %c0_10 = arith.constant 0 : index
    %c0_11 = arith.constant 0 : index
    %28 = vector.load %arg4[%c0_10, %c0_11] : memref<32x32xf32, #tpu.memory_space<vmem>>, vector<32x32xf32>
    %cst_12 = arith.constant dense<0.000000e+00> : vector<8x32xf32>
    %29 = tpu.matmul %27, %28, %cst_12 {dimension_numbers = #tpu.dot_dimension_numbers<[1], [0], [0], [1], [0, 0, 1, 1], [], []>} : vector<8x32xf32>, vector<32x32xf32>, vector<8x32xf32> -> vector<8x32xf32>
    %30 = math.cos %29 : vector<8x32xf32>
    %31 = math.sin %29 : vector<8x32xf32>
    %c64 = arith.constant 64 : index
    %c0_13 = arith.constant 0 : index
    %32 = vector.load %arg5[%c64, %c0_13] : memref<128x32xf32, #tpu.memory_space<vmem>>, vector<1x32xf32>
    %c80 = arith.constant 80 : index
    %c0_14 = arith.constant 0 : index
    %33 = vector.load %arg5[%c80, %c0_14] : memref<128x32xf32, #tpu.memory_space<vmem>>, vector<1x32xf32>
    %34 = vector.extract_strided_slice %30 {offsets = [0, 0], sizes = [8, 1], strides = [1, 1]} : vector<8x32xf32> to vector<8x1xf32>
    %35 = vector.broadcast %34 : vector<8x1xf32> to vector<8x32xf32>
    %36 = vector.broadcast %32 : vector<1x32xf32> to vector<8x32xf32>
    %37 = arith.mulf %35, %36 : vector<8x32xf32>
    %38 = vector.extract_strided_slice %31 {offsets = [0, 16], sizes = [8, 1], strides = [1, 1]} : vector<8x32xf32> to vector<8x1xf32>
    %39 = vector.broadcast %38 : vector<8x1xf32> to vector<8x32xf32>
    %40 = vector.broadcast %33 : vector<1x32xf32> to vector<8x32xf32>
    %41 = arith.mulf %39, %40 : vector<8x32xf32>
    %42 = arith.addf %37, %41 : vector<8x32xf32>
    %43 = vector.extract_strided_slice %42 {offsets = [0, 16], sizes = [8, 16], strides = [1, 1]} : vector<8x32xf32> to vector<8x16xf32>
    %44 = vector.extract_strided_slice %42 {offsets = [0, 0], sizes = [8, 16], strides = [1, 1]} : vector<8x32xf32> to vector<8x16xf32>
    %45 = tpu.concatenate %43, %44 in 1 : vector<8x16xf32>, vector<8x16xf32> -> vector<8x32xf32>
    %46 = arith.mulf %42, %30 : vector<8x32xf32>
    %47 = arith.mulf %45, %31 : vector<8x32xf32>
    %48 = arith.addf %46, %47 : vector<8x32xf32>
    %c96 = arith.constant 96 : index
    %c0_15 = arith.constant 0 : index
    %49 = vector.load %arg5[%c96, %c0_15] : memref<128x32xf32, #tpu.memory_space<vmem>>, vector<32x32xf32>
    %cst_16 = arith.constant dense<0.000000e+00> : vector<8x32xf32>
    %50 = tpu.matmul %48, %49, %cst_16 {dimension_numbers = #tpu.dot_dimension_numbers<[1], [0], [0], [1], [0, 0, 1, 1], [], []>} : vector<8x32xf32>, vector<32x32xf32>, vector<8x32xf32> -> vector<8x32xf32>
    %51 = arith.mulf %50, %50 : vector<8x32xf32>
    %c0_17 = arith.constant 0 : index
    %c0_18 = arith.constant 0 : index
    %52 = vector.load %arg6[%c0_17, %c0_18] : memref<32x128xf32, #tpu.memory_space<vmem>>, vector<32x128xf32>
    %cst_19 = arith.constant dense<0.000000e+00> : vector<8x128xf32>
    %53 = tpu.matmul %51, %52, %cst_19 {dimension_numbers = #tpu.dot_dimension_numbers<[1], [0], [0], [1], [0, 0, 1, 1], [], []>} : vector<8x32xf32>, vector<32x128xf32>, vector<8x128xf32> -> vector<8x128xf32>
    %c0_20 = arith.constant 0 : index
    %c0_21 = arith.constant 0 : index
    %54 = vector.load %arg7[%c0_20, %c0_21] : memref<1x128xf32, #tpu.memory_space<vmem>>, vector<1x128xf32>
    %55 = vector.broadcast %54 : vector<1x128xf32> to vector<8x128xf32>
    %56 = arith.addf %53, %55 : vector<8x128xf32>
    %c0_22 = arith.constant 0 : index
    %c0_23 = arith.constant 0 : index
    %57 = vector.load %arg8[%c0_22, %c0_23] : memref<8x128xf32, #tpu.memory_space<vmem>>, vector<8x128xf32>
    tpu.vector_store %arg8[%c0_22, %c0_23], %56 {strides = array<i32>} : memref<8x128xf32, #tpu.memory_space<vmem>>, vector<8x128xf32>,
    return
  }
  func.func @transform_0(%arg0: i32) -> (i32, i32) {
    %c0_i32 = arith.constant 0 : i32
    %c0_i32_0 = arith.constant 0 : i32
    return %arg0, %c0_i32 : i32, i32
  }
  func.func @transform_1(%arg0: i32) -> (i32, i32) {
    %c0_i32 = arith.constant 0 : i32
    %c0_i32_0 = arith.constant 0 : i32
    %c0_i32_1 = arith.constant 0 : i32
    return %c0_i32, %c0_i32_0 : i32, i32
  }
  func.func @transform_2(%arg0: i32) -> (i32, i32) {
    %c0_i32 = arith.constant 0 : i32
    %c0_i32_0 = arith.constant 0 : i32
    %c0_i32_1 = arith.constant 0 : i32
    return %c0_i32, %c0_i32_0 : i32, i32
  }
  func.func @transform_3(%arg0: i32) -> (i32, i32) {
    %c0_i32 = arith.constant 0 : i32
    %c0_i32_0 = arith.constant 0 : i32
    %c0_i32_1 = arith.constant 0 : i32
    return %c0_i32, %c0_i32_0 : i32, i32
  }
  func.func @transform_4(%arg0: i32) -> (i32, i32) {
    %c0_i32 = arith.constant 0 : i32
    %c0_i32_0 = arith.constant 0 : i32
    %c0_i32_1 = arith.constant 0 : i32
    return %c0_i32, %c0_i32_0 : i32, i32
  }
  func.func @transform_5(%arg0: i32) -> (i32, i32) {
    %c0_i32 = arith.constant 0 : i32
    %c0_i32_0 = arith.constant 0 : i32
    %c0_i32_1 = arith.constant 0 : i32
    return %c0_i32, %c0_i32_0 : i32, i32
  }
  func.func @transform_6(%arg0: i32) -> (i32, i32) {
    %c0_i32 = arith.constant 0 : i32
    %c0_i32_0 = arith.constant 0 : i32
    %c0_i32_1 = arith.constant 0 : i32
    return %c0_i32, %c0_i32_0 : i32, i32
  }
  func.func @transform_7(%arg0: i32) -> (i32, i32) {
    %c0_i32 = arith.constant 0 : i32
    %c0_i32_0 = arith.constant 0 : i32
    return %arg0, %c0_i32 : i32, i32
  }
}

</mosaic_0001>

<llo_original>
// kernel: qiddm_forward.1
$region0: #{qiddm_forward.1}
  #allocation0 [shape = 'u32[]', space=smem, size = 0x4, offset = 0x4, fixed_abs, tag = 'smem constant byte address 0x4 - core index']
  #allocation1 [shape = 'u32[144,128]{1,0:T(1,128)}', space=vmem, size = 0x12000, scoped, tag = 'internal scratch']
  %s0 = inlined_call_operand.vmem [shape: f32[8,128], index: 0, kind: input, shape index: {}]
  %s1 = inlined_call_operand.vmem [shape: f32[128,32], index: 1, kind: input, shape index: {}]
  %s2 = inlined_call_operand.vmem [shape: f32[1,32], index: 2, kind: input, shape index: {}]
  %s3 = inlined_call_operand.vmem [shape: f32[32,32], index: 3, kind: input, shape index: {}]
  %s4 = inlined_call_operand.vmem [shape: f32[128,32], index: 4, kind: input, shape index: {}]
  %s5 = inlined_call_operand.vmem [shape: f32[32,128], index: 5, kind: input, shape index: {}]
  %s6 = inlined_call_operand.vmem [shape: f32[1,128], index: 6, kind: input, shape index: {}]
  %s7 = inlined_call_operand.vmem [shape: f32[8,128], index: 7, kind: output, shape index: {}]
  %s8 = sld [smem:[#allocation0]]
  $region38: #{qiddm_forward.1} parent=0
    _
  %s10 = ssub.s32 1, %s8
  %s11 = scalar_select 0, %s10, %s8
  // Predicated region
  $region2: #{qiddm_forward.1} parent=0 // pred_check
    _
  $region3: #{qiddm_forward.1} parent=0 // pred_check_branch
    %13 = sbr.rel (0) target = $region5
  $region4: #{qiddm_forward.1} parent=0 // pred_region
    _
  $region5: #{qiddm_forward.1} parent=0 // pred_fallthru
    _
  // Predicated region
  $region6: #{qiddm_forward.1} parent=0 // pred_check
    _
  $region7: #{qiddm_forward.1} parent=0 // pred_check_branch
    %15 = sbr.rel (0) target = $region9
  $region8: #{qiddm_forward.1} parent=0 // pred_region
    _
  $region9: #{qiddm_forward.1} parent=0 // pred_fallthru
    _
  // Predicated region
  $region10: #{qiddm_forward.1} parent=0 // pred_check
    _
  $region11: #{qiddm_forward.1} parent=0 // pred_check_branch
    %17 = sbr.rel (0) target = $region13
  $region12: #{qiddm_forward.1} parent=0 // pred_region
    _
  $region13: #{qiddm_forward.1} parent=0 // pred_fallthru
    _
  // Predicated region
  $region14: #{qiddm_forward.1} parent=0 // pred_check
    _
  $region15: #{qiddm_forward.1} parent=0 // pred_check_branch
    %19 = sbr.rel (0) target = $region17
  $region16: #{qiddm_forward.1} parent=0 // pred_region
    _
  $region17: #{qiddm_forward.1} parent=0 // pred_fallthru
    _
  // Predicated region
  $region18: #{qiddm_forward.1} parent=0 // pred_check
    _
  $region19: #{qiddm_forward.1} parent=0 // pred_check_branch
    %21 = sbr.rel (0) target = $region21
  $region20: #{qiddm_forward.1} parent=0 // pred_region
    _
  $region21: #{qiddm_forward.1} parent=0 // pred_fallthru
    _
  // Predicated region
  $region22: #{qiddm_forward.1} parent=0 // pred_check
    _
  $region23: #{qiddm_forward.1} parent=0 // pred_check_branch
    %23 = sbr.rel (0) target = $region25
  $region24: #{qiddm_forward.1} parent=0 // pred_region
    _
  $region25: #{qiddm_forward.1} parent=0 // pred_fallthru
    _
  // Predicated region
  $region26: #{qiddm_forward.1} parent=0 // pred_check
    _
  $region27: #{qiddm_forward.1} parent=0 // pred_check_branch
    %25 = sbr.rel (0) target = $region29
  $region28: #{qiddm_forward.1} parent=0 // pred_region
    _
  $region29: #{qiddm_forward.1} parent=0 // pred_fallthru
    _
  %v26 = vld [vmem:[%s0] sm:$0xff]
  %v27 = vld [vmem:[%s1] sm:$0xff]
  %v28 = vld [vmem:[%s1 + $0x8] sm:$0xff]
  %v29 = vld [vmem:[%s1 + $0x10] sm:$0xff]
  %v30 = vld [vmem:[%s1 + $0x18] sm:$0xff]
  %v31 = vld [vmem:[%s1 + $0x20] sm:$0xff]
  %v32 = vld [vmem:[%s1 + $0x28] sm:$0xff]
  %v33 = vld [vmem:[%s1 + $0x30] sm:$0xff]
  %v34 = vld [vmem:[%s1 + $0x38] sm:$0xff]
  %v35 = vld [vmem:[%s1 + $0x40] sm:$0xff]
  %v36 = vld [vmem:[%s1 + $0x48] sm:$0xff]
  %v37 = vld [vmem:[%s1 + $0x50] sm:$0xff]
  %v38 = vld [vmem:[%s1 + $0x58] sm:$0xff]
  %v39 = vld [vmem:[%s1 + $0x60] sm:$0xff]
  %v40 = vld [vmem:[%s1 + $0x68] sm:$0xff]
  %v41 = vld [vmem:[%s1 + $0x70] sm:$0xff]
  %v42 = vld [vmem:[%s1 + $0x78] sm:$0xff]
  %v43 = vld [vmem:[%s2] sm:$0x1]
  %v45 = vlaneseq
  %v46 = vshrl.u32 %v45, 7
  %v47 = vsub.s32 0, %v46
  %v48 = vrot.slane %v43, %v47
  %50 = vmatprep.subr.mxu0 0.0
  %51 = vmatpush1.msra.mxu0 %v42
  %52 = vmatprep.subr.mxu0 0.0
  %53 = vmatpush1.msra.mxu0 %v41
  %54 = vmatprep.subr.mxu0 0.0
  %55 = vmatpush1.msra.mxu0 %v40
  %56 = vmatprep.subr.mxu0 0.0
  %57 = vmatpush1.msra.mxu0 %v39
  %58 = vmatprep.subr.mxu0 0.0
  %59 = vmatpush1.msra.mxu0 %v38
  %60 = vmatprep.subr.mxu0 0.0
  %61 = vmatpush1.msra.mxu0 %v37
  %62 = vmatprep.subr.mxu0 0.0
  %63 = vmatpush1.msra.mxu0 %v36
  %64 = vmatprep.subr.mxu0 0.0
  %65 = vmatpush1.msra.mxu0 %v35
  %66 = vmatprep.subr.mxu0 0.0
  %67 = vmatpush1.msra.mxu0 %v34
  %68 = vmatprep.subr.mxu0 0.0
  %69 = vmatpush1.msra.mxu0 %v33
  %70 = vmatprep.subr.mxu0 0.0
  %71 = vmatpush1.msra.mxu0 %v32
  %72 = vmatprep.subr.mxu0 0.0
  %73 = vmatpush1.msra.mxu0 %v31
  %74 = vmatprep.subr.mxu0 0.0
  %75 = vmatpush1.msra.mxu0 %v30
  %76 = vmatprep.subr.mxu0 0.0
  %77 = vmatpush1.msra.mxu0 %v29
  %78 = vmatprep.subr.mxu0 0.0
  %79 = vmatpush1.msra.mxu0 %v28
  %80 = vmatprep.subr.mxu0 0.0
  %81 = vmatpush1.msra.mxu0 %v27
  %82 = vmatprep.subr.mxu0 0.0
  %83 = vmatpush2.msra.mxu0 0.0
  %84 = vmatprep.subr.mxu0 0.0
  %85 = vmatpush2.msra.mxu0 0.0
  %86 = vmatprep.subr.mxu0 0.0
  %87 = vmatpush2.msra.mxu0 0.0
  %88 = vmatprep.subr.mxu0 0.0
  %89 = vmatpush2.msra.mxu0 0.0
  %90 = vmatprep.subr.mxu0 0.0
  %91 = vmatpush2.msra.mxu0 0.0
  %92 = vmatprep.subr.mxu0 0.0
  %93 = vmatpush2.msra.mxu0 0.0
  %94 = vmatprep.subr.mxu0 0.0
  %95 = vmatpush2.msra.mxu0 0.0
  %96 = vmatprep.subr.mxu0 0.0
  %97 = vmatpush2.msra.mxu0 0.0
  %98 = vmatprep.subr.mxu0 0.0
  %99 = vmatpush2.msra.mxu0 0.0
  %100 = vmatprep.subr.mxu0 0.0
  %101 = vmatpush2.msra.mxu0 0.0
  %102 = vmatprep.subr.mxu0 0.0
  %103 = vmatpush2.msra.mxu0 0.0
  %104 = vmatprep.subr.mxu0 0.0
  %105 = vmatpush2.msra.mxu0 0.0
  %106 = vmatprep.subr.mxu0 0.0
  %107 = vmatpush2.msra.mxu0 0.0
  %108 = vmatprep.subr.mxu0 0.0
  %109 = vmatpush2.msra.mxu0 0.0
  %110 = vmatprep.subr.mxu0 0.0
  %111 = vmatpush2.msra.mxu0 0.0
  %112 = vmatprep.subr.mxu0 0.0
  %113 = vmatpush2.msra.mxu0 0.0
  %114 = vmatprep.mubr.f32.mxu0 0.0
  %115 = vmatmul.mubr.f32.gmra.mxu0 %v26
  %v116 = vpop.f32.mrf.mxu0
  %v117 = vadd.f32 %v48, %v116
  %v118 = vpop.f32.mrf.mxu0
  %119 = vdwg.mxu0
  %v120 = vand.u32 2147483647, %v117
  %vm121 = vcmp.le.f32.partialorder %v120, 0.7853982
  %vm122 = vcmp.lt.s32.totalorder %v117, 0
  %v123 = vand.u32 %v117, 2139095040
  %v124 = vshrl.u32 %v123, 23
  %v125 = vsub.s32 %v124, 127
  %v126 = vand.u32 2147483647, %v117
  %v127 = vand.u32 %v126, 8388607
  %v128 = vor.u32 %v127, 8388608
  %v129 = vsub.s32 0, %v128
  %v130 = vadd.s32 %v125, 1
  %vm131 = vcmp.gt.s32.totalorder %v130, 0
  %v132 = vsel %vm131, %v130, 0
  %v133 = vshrl.u32 %v132, 5
  %v134 = vand.u32 %v132, 31
  %v135 = vsub.s32 32, %v134
  %v136 = vshrl.u32 683565275, %v135
  %v137 = vshll.u32 683565275, %v134
  %v138 = vshrl.u32 2475754826, %v135
  %v139 = vor.u32 %v137, %v138
  %v140 = vshll.u32 2475754826, %v134
  %v141 = vshrl.u32 2131351028, %v135
  %v142 = vor.u32 %v140, %v141
  %v143 = vshll.u32 2131351028, %v134
  %v144 = vshrl.u32 2102212464, %v135
  %v145 = vor.u32 %v143, %v144
  %v146 = vshll.u32 2102212464, %v134
  %v147 = vshrl.u32 920167782, %v135
  %v148 = vor.u32 %v146, %v147
  %v149 = vshll.u32 920167782, %v134
  %v150 = vshrl.u32 1326507024, %v135
  %v151 = vor.u32 %v149, %v150
  %vm152 = vcmp.lt.s32.totalorder %v133, 1
  %vm153 = vcmp.lt.s32.totalorder %v133, 2
  %vm154 = vcmp.lt.s32.totalorder %v133, 3
  %vm155 = vcmp.lt.s32.totalorder %v133, 4
  %v156 = vsel %vm152, %v136, %v139
  %v157 = vsel %vm155, %v145, 2102212464
  %v158 = vsel %vm154, %v142, %v157
  %v159 = vsel %vm153, %v156, %v158
  %v160 = vsel %vm152, %v139, %v142
  %v161 = vsel %vm155, %v148, 920167782
  %v162 = vsel %vm154, %v145, %v161
  %v163 = vsel %vm153, %v160, %v162
  %v164 = vsel %vm152, %v142, %v145
  %v165 = vsel %vm155, %v151, 1326507024
  %v166 = vsel %vm154, %v148, %v165
  %v167 = vsel %vm153, %v164, %v166
  %v168 = vshll.u32 %v128, 8
  %v169 = vmul.u32.u64.compose %v168, %v167
  %v170 = vextract.low.u32 %v169
  %v171 = vextract.high.u32 %v169
  %v172 = vmul.u32.u64.compose %v168, %v163
  %v173 = vextract.low.u32 %v172
  %v174 = vextract.high.u32 %v172
  %v175 = vmul.u32 %v168, %v159
  %v176 = vadd.s32 %v171, %v173
  %vm177 = vc.u32 %v171, %v173
  %v178 = vadd.s32 %v174, 1
  %v179 = vsel %vm177, %v178, %v174
  %v180 = vadd.s32 %v175, %v179
  %v181 = vadd.s32 %v180, 536870912
  %v182 = vshrl.u32 %v181, 30
  %v183 = vshll.u32 %v182, 30
  %v184 = vsub.s32 %v180, %v183
  %vm185 = vcmp.lt.s32.totalorder %v184, 0
  %v186 = vsub.s32 0, %v184
  %v187 = vsel %vm185, %v186, %v184
  %v188 = vclz %v187
  %v189 = vsub.s32 %v188, 2
  %vm190 = vcmp.gt.s32.totalorder 0, %v189
  %v191 = vsel %vm190, 0, %v189
  %v192 = vsub.s32 32, %v191
  %v193 = vshll.u32 %v184, %v191
  %v194 = vshrl.u32 %v176, %v192
  %v195 = vor.u32 %v193, %v194
  %v196 = vsub.s32 4294967266, %v191
  %v197 = vadd.s32 %v196, 127
  %v198 = vshll.u32 %v197, 23
  %v199 = vor.u32 4788187, %v198
  %v200 = vand.u32 2147483647, %v199
  %v202 = vcvt.s32.f32 %v195
  %v203 = vmul.f32 %v202, %v200
  %v204 = vxor.u32 %v203, 2147483648
  %v205 = vsel %vm122, %v204, %v203
  %v206 = vsub.s32 4, %v182
  %v207 = vsel %vm122, %v206, %v182
  %v208 = vsel %vm121, %v117, %v205
  %v209 = vsel %vm121, 0, %v207
  %v210 = vcosq.f32.pop %v208
  %v211 = vsinq.f32.pop %v208
  %vm212 = vweird.f32 %v117
  %v213 = vand.u32 %v209, 3
  %vm214 = vcmp.lt.s32.totalorder %v213, 2
  %vm215 = vcmp.eq.s32.totalorder %v213, 0
  %v216 = vxor.u32 %v211, 2147483648
  %v217 = vsel %vm215, %v210, %v216
  %vm218 = vcmp.eq.s32.totalorder %v213, 2
  %v219 = vxor.u32 %v210, 2147483648
  %v220 = vsel %vm218, %v219, %v211
  %v221 = vsel %vm214, %v217, %v220
  %v222 = vsel %vm212, nan, %v221
  %v223 = vand.u32 2147483647, %v117
  %vm224 = vcmp.le.f32.partialorder %v223, 0.7853982
  %vm225 = vcmp.lt.s32.totalorder %v117, 0
  %v226 = vand.u32 %v117, 2139095040
  %v227 = vshrl.u32 %v226, 23
  %v228 = vsub.s32 %v227, 127
  %v229 = vand.u32 2147483647, %v117
  %v230 = vand.u32 %v229, 8388607
  %v231 = vor.u32 %v230, 8388608
  %v232 = vsub.s32 0, %v231
  %v233 = vadd.s32 %v228, 1
  %vm234 = vcmp.gt.s32.totalorder %v233, 0
  %v235 = vsel %vm234, %v233, 0
  %v236 = vshrl.u32 %v235, 5
  %v237 = vand.u32 %v235, 31
  %v238 = vsub.s32 32, %v237
  %v239 = vshrl.u32 683565275, %v238
  %v240 = vshll.u32 683565275, %v237
  %v241 = vshrl.u32 2475754826, %v238
  %v242 = vor.u32 %v240, %v241
  %v243 = vshll.u32 2475754826, %v237
  %v244 = vshrl.u32 2131351028, %v238
  %v245 = vor.u32 %v243, %v244
  %v246 = vshll.u32 2131351028, %v237
  %v247 = vshrl.u32 2102212464, %v238
  %v248 = vor.u32 %v246, %v247
  %v249 = vshll.u32 2102212464, %v237
  %v250 = vshrl.u32 920167782, %v238
  %v251 = vor.u32 %v249, %v250
  %v252 = vshll.u32 920167782, %v237
  %v253 = vshrl.u32 1326507024, %v238
  %v254 = vor.u32 %v252, %v253
  %vm255 = vcmp.lt.s32.totalorder %v236, 1
  %vm256 = vcmp.lt.s32.totalorder %v236, 2
  %vm257 = vcmp.lt.s32.totalorder %v236, 3
  %vm258 = vcmp.lt.s32.totalorder %v236, 4
  %v259 = vsel %vm255, %v239, %v242
  %v260 = vsel %vm258, %v248, 2102212464
  %v261 = vsel %vm257, %v245, %v260
  %v262 = vsel %vm256, %v259, %v261
  %v263 = vsel %vm255, %v242, %v245
  %v264 = vsel %vm258, %v251, 920167782
  %v265 = vsel %vm257, %v248, %v264
  %v266 = vsel %vm256, %v263, %v265
  %v267 = vsel %vm255, %v245, %v248
  %v268 = vsel %vm258, %v254, 1326507024
  %v269 = vsel %vm257, %v251, %v268
  %v270 = vsel %vm256, %v267, %v269
  %v271 = vshll.u32 %v231, 8
  %v272 = vmul.u32.u64.compose %v271, %v270
  %v273 = vextract.low.u32 %v272
  %v274 = vextract.high.u32 %v272
  %v275 = vmul.u32.u64.compose %v271, %v266
  %v276 = vextract.low.u32 %v275
  %v277 = vextract.high.u32 %v275
  %v278 = vmul.u32 %v271, %v262
  %v279 = vadd.s32 %v274, %v276
  %vm280 = vc.u32 %v274, %v276
  %v281 = vadd.s32 %v277, 1
  %v282 = vsel %vm280, %v281, %v277
  %v283 = vadd.s32 %v278, %v282
  %v284 = vadd.s32 %v283, 536870912
  %v285 = vshrl.u32 %v284, 30
  %v286 = vshll.u32 %v285, 30
  %v287 = vsub.s32 %v283, %v286
  %vm288 = vcmp.lt.s32.totalorder %v287, 0
  %v289 = vsub.s32 0, %v287
  %v290 = vsel %vm288, %v289, %v287
  %v291 = vclz %v290
  %v292 = vsub.s32 %v291, 2
  %vm293 = vcmp.gt.s32.totalorder 0, %v292
  %v294 = vsel %vm293, 0, %v292
  %v295 = vsub.s32 32, %v294
  %v296 = vshll.u32 %v287, %v294
  %v297 = vshrl.u32 %v279, %v295
  %v298 = vor.u32 %v296, %v297
  %v299 = vsub.s32 4294967266, %v294
  %v300 = vadd.s32 %v299, 127
  %v301 = vshll.u32 %v300, 23
  %v302 = vor.u32 4788187, %v301
  %v303 = vand.u32 2147483647, %v302
  %v305 = vcvt.s32.f32 %v298
  %v306 = vmul.f32 %v305, %v303
  %v307 = vxor.u32 %v306, 2147483648
  %v308 = vsel %vm225, %v307, %v306
  %v309 = vsub.s32 4, %v285
  %v310 = vsel %vm225, %v309, %v285
  %v311 = vsel %vm224, %v117, %v308
  %v312 = vsel %vm224, 0, %v310
  %v313 = vcosq.f32.pop %v311
  %v314 = vsinq.f32.pop %v311
  %vm315 = vweird.f32 %v117
  %v316 = vadd.s32 %v312, 3
  %v317 = vand.u32 %v316, 3
  %vm318 = vcmp.lt.s32.totalorder %v317, 2
  %vm319 = vcmp.eq.s32.totalorder %v317, 0
  %v320 = vxor.u32 %v314, 2147483648
  %v321 = vsel %vm319, %v313, %v320
  %vm322 = vcmp.eq.s32.totalorder %v317, 2
  %v323 = vxor.u32 %v313, 2147483648
  %v324 = vsel %vm322, %v323, %v314
  %v325 = vsel %vm318, %v321, %v324
  %v326 = vsel %vm315, nan, %v325
  %v327 = vld [vmem:[%s4] sm:$0x1]
  %v328 = vld [vmem:[%s4 + $0x10] sm:$0x1]
  %330 = vset.pattern.permute.xlu0 0
  %331 = vperm.xlu0 %330, %v222
  %v332 = vpop.permute.xlu0 %331
  %v334 = vlaneseq
  %v335 = vshrl.u32 %v334, 7
  %v336 = vsub.s32 0, %v335
  %v337 = vrot.slane %v327, %v336
  %v338 = vmul.f32 %v332, %v337
  %340 = vset.pattern.permute.xlu0 16
  %341 = vperm.xlu0 %340, %v326
  %v342 = vpop.permute.xlu0 %341
  %v344 = vlaneseq
  %v345 = vshrl.u32 %v344, 7
  %v346 = vsub.s32 0, %v345
  %v347 = vrot.slane %v328, %v346
  %v348 = vmul.f32 %v342, %v347
  %v349 = vadd.f32 %v338, %v348
  %351 = vrot.lane.b32.xlu0 %v349, 112
  %v352 = vpop.permute.xlu0 %351
  %354 = vrot.lane.b32.xlu0 %v349, 16
  %v355 = vpop.permute.xlu0 %354
  %vm357 = vcmask 130048
  %v358 = vsel %vm357, %v352, %v355
  %v359 = vmul.f32 %v349, %v222
  %v360 = vmul.f32 %v358, %v326
  %v361 = vadd.f32 %v359, %v360
  %v362 = vld [vmem:[%s4 + $0x20] sm:$0xff]
  %v363 = vld [vmem:[%s4 + $0x28] sm:$0xff]
  %v364 = vld [vmem:[%s4 + $0x30] sm:$0xff]
  %v365 = vld [vmem:[%s4 + $0x38] sm:$0xff]
  %vm366 = vcmask 261120
  %v368 = vsel %vm366, %v361, 0
  %370 = vmatprep.subr.mxu0 0.0
  %371 = vmatpush1.msra.mxu0 0.0
  %372 = vmatprep.subr.mxu0 0.0
  %373 = vmatpush1.msra.mxu0 0.0
  %374 = vmatprep.subr.mxu0 0.0
  %375 = vmatpush1.msra.mxu0 0.0
  %376 = vmatprep.subr.mxu0 0.0
  %377 = vmatpush1.msra.mxu0 0.0
  %378 = vmatprep.subr.mxu0 0.0
  %379 = vmatpush1.msra.mxu0 0.0
  %380 = vmatprep.subr.mxu0 0.0
  %381 = vmatpush1.msra.mxu0 0.0
  %382 = vmatprep.subr.mxu0 0.0
  %383 = vmatpush1.msra.mxu0 0.0
  %384 = vmatprep.subr.mxu0 0.0
  %385 = vmatpush1.msra.mxu0 0.0
  %386 = vmatprep.subr.mxu0 0.0
  %387 = vmatpush1.msra.mxu0 0.0
  %388 = vmatprep.subr.mxu0 0.0
  %389 = vmatpush1.msra.mxu0 0.0
  %390 = vmatprep.subr.mxu0 0.0
  %391 = vmatpush1.msra.mxu0 0.0
  %392 = vmatprep.subr.mxu0 0.0
  %393 = vmatpush1.msra.mxu0 0.0
  %394 = vmatprep.subr.mxu0 0.0
  %395 = vmatpush1.msra.mxu0 %v365
  %396 = vmatprep.subr.mxu0 0.0
  %397 = vmatpush1.msra.mxu0 %v364
  %398 = vmatprep.subr.mxu0 0.0
  %399 = vmatpush1.msra.mxu0 %v363
  %400 = vmatprep.subr.mxu0 0.0
  %401 = vmatpush1.msra.mxu0 %v362
  %402 = vmatprep.subr.mxu0 0.0
  %403 = vmatpush2.msra.mxu0 0.0
  %404 = vmatprep.subr.mxu0 0.0
  %405 = vmatpush2.msra.mxu0 0.0
  %406 = vmatprep.subr.mxu0 0.0
  %407 = vmatpush2.msra.mxu0 0.0
  %408 = vmatprep.subr.mxu0 0.0
  %409 = vmatpush2.msra.mxu0 0.0
  %410 = vmatprep.subr.mxu0 0.0
  %411 = vmatpush2.msra.mxu0 0.0
  %412 = vmatprep.subr.mxu0 0.0
  %413 = vmatpush2.msra.mxu0 0.0
  %414 = vmatprep.subr.mxu0 0.0
  %415 = vmatpush2.msra.mxu0 0.0
  %416 = vmatprep.subr.mxu0 0.0
  %417 = vmatpush2.msra.mxu0 0.0
  %418 = vmatprep.subr.mxu0 0.0
  %419 = vmatpush2.msra.mxu0 0.0
  %420 = vmatprep.subr.mxu0 0.0
  %421 = vmatpush2.msra.mxu0 0.0
  %422 = vmatprep.subr.mxu0 0.0
  %423 = vmatpush2.msra.mxu0 0.0
  %424 = vmatprep.subr.mxu0 0.0
  %425 = vmatpush2.msra.mxu0 0.0
  %426 = vmatprep.subr.mxu0 0.0
  %427 = vmatpush2.msra.mxu0 0.0
  %428 = vmatprep.subr.mxu0 0.0
  %429 = vmatpush2.msra.mxu0 0.0
  %430 = vmatprep.subr.mxu0 0.0
  %431 = vmatpush2.msra.mxu0 0.0
  %432 = vmatprep.subr.mxu0 0.0
  %433 = vmatpush2.msra.mxu0 0.0
  %434 = vmatprep.mubr.f32.mxu0 0.0
  %435 = vmatmul.mubr.f32.gmra.mxu0 %v368
  %v436 = vpop.f32.mrf.mxu0
  %v437 = vadd.f32 0.0, %v436
  %v438 = vpop.f32.mrf.mxu0
  %439 = vdwg.mxu0
  %v440 = vmul.f32 %v437, %v437
  %v441 = vld [vmem:[%s3] sm:$0xff]
  %v442 = vld [vmem:[%s3 + $0x8] sm:$0xff]
  %v443 = vld [vmem:[%s3 + $0x10] sm:$0xff]
  %v444 = vld [vmem:[%s3 + $0x18] sm:$0xff]
  %v446 = vsel %vm366, %v440, 0
  %448 = vmatprep.subr.mxu0 0.0
  %449 = vmatpush1.msra.mxu0 0.0
  %450 = vmatprep.subr.mxu0 0.0
  %451 = vmatpush1.msra.mxu0 0.0
  %452 = vmatprep.subr.mxu0 0.0
  %453 = vmatpush1.msra.mxu0 0.0
  %454 = vmatprep.subr.mxu0 0.0
  %455 = vmatpush1.msra.mxu0 0.0
  %456 = vmatprep.subr.mxu0 0.0
  %457 = vmatpush1.msra.mxu0 0.0
  %458 = vmatprep.subr.mxu0 0.0
  %459 = vmatpush1.msra.mxu0 0.0
  %460 = vmatprep.subr.mxu0 0.0
  %461 = vmatpush1.msra.mxu0 0.0
  %462 = vmatprep.subr.mxu0 0.0
  %463 = vmatpush1.msra.mxu0 0.0
  %464 = vmatprep.subr.mxu0 0.0
  %465 = vmatpush1.msra.mxu0 0.0
  %466 = vmatprep.subr.mxu0 0.0
  %467 = vmatpush1.msra.mxu0 0.0
  %468 = vmatprep.subr.mxu0 0.0
  %469 = vmatpush1.msra.mxu0 0.0
  %470 = vmatprep.subr.mxu0 0.0
  %471 = vmatpush1.msra.mxu0 0.0
  %472 = vmatprep.subr.mxu0 0.0
  %473 = vmatpush1.msra.mxu0 %v444
  %474 = vmatprep.subr.mxu0 0.0
  %475 = vmatpush1.msra.mxu0 %v443
  %476 = vmatprep.subr.mxu0 0.0
  %477 = vmatpush1.msra.mxu0 %v442
  %478 = vmatprep.subr.mxu0 0.0
  %479 = vmatpush1.msra.mxu0 %v441
  %480 = vmatprep.subr.mxu0 0.0
  %481 = vmatpush2.msra.mxu0 0.0
  %482 = vmatprep.subr.mxu0 0.0
  %483 = vmatpush2.msra.mxu0 0.0
  %484 = vmatprep.subr.mxu0 0.0
  %485 = vmatpush2.msra.mxu0 0.0
  %486 = vmatprep.subr.mxu0 0.0
  %487 = vmatpush2.msra.mxu0 0.0
  %488 = vmatprep.subr.mxu0 0.0
  %489 = vmatpush2.msra.mxu0 0.0
  %490 = vmatprep.subr.mxu0 0.0
  %491 = vmatpush2.msra.mxu0 0.0
  %492 = vmatprep.subr.mxu0 0.0
  %493 = vmatpush2.msra.mxu0 0.0
  %494 = vmatprep.subr.mxu0 0.0
  %495 = vmatpush2.msra.mxu0 0.0
  %496 = vmatprep.subr.mxu0 0.0
  %497 = vmatpush2.msra.mxu0 0.0
  %498 = vmatprep.subr.mxu0 0.0
  %499 = vmatpush2.msra.mxu0 0.0
  %500 = vmatprep.subr.mxu0 0.0
  %501 = vmatpush2.msra.mxu0 0.0
  %502 = vmatprep.subr.mxu0 0.0
  %503 = vmatpush2.msra.mxu0 0.0
  %504 = vmatprep.subr.mxu0 0.0
  %505 = vmatpush2.msra.mxu0 0.0
  %506 = vmatprep.subr.mxu0 0.0
  %507 = vmatpush2.msra.mxu0 0.0
  %508 = vmatprep.subr.mxu0 0.0
  %509 = vmatpush2.msra.mxu0 0.0
  %510 = vmatprep.subr.mxu0 0.0
  %511 = vmatpush2.msra.mxu0 0.0
  %512 = vmatprep.mubr.f32.mxu0 0.0
  %513 = vmatmul.mubr.f32.gmra.mxu0 %v446
  %v514 = vpop.f32.mrf.mxu0
  %v515 = vadd.f32 0.0, %v514
  %v516 = vpop.f32.mrf.mxu0
  %517 = vdwg.mxu0
  %v518 = vand.u32 2147483647, %v515
  %vm519 = vcmp.le.f32.partialorder %v518, 0.7853982
  %vm520 = vcmp.lt.s32.totalorder %v515, 0
  %v521 = vand.u32 %v515, 2139095040
  %v522 = vshrl.u32 %v521, 23
  %v523 = vsub.s32 %v522, 127
  %v524 = vand.u32 2147483647, %v515
  %v525 = vand.u32 %v524, 8388607
  %v526 = vor.u32 %v525, 8388608
  %v527 = vsub.s32 0, %v526
  %v528 = vadd.s32 %v523, 1
  %vm529 = vcmp.gt.s32.totalorder %v528, 0
  %v530 = vsel %vm529, %v528, 0
  %v531 = vshrl.u32 %v530, 5
  %v532 = vand.u32 %v530, 31
  %v533 = vsub.s32 32, %v532
  %v534 = vshrl.u32 683565275, %v533
  %v535 = vshll.u32 683565275, %v532
  %v536 = vshrl.u32 2475754826, %v533
  %v537 = vor.u32 %v535, %v536
  %v538 = vshll.u32 2475754826, %v532
  %v539 = vshrl.u32 2131351028, %v533
  %v540 = vor.u32 %v538, %v539
  %v541 = vshll.u32 2131351028, %v532
  %v542 = vshrl.u32 2102212464, %v533
  %v543 = vor.u32 %v541, %v542
  %v544 = vshll.u32 2102212464, %v532
  %v545 = vshrl.u32 920167782, %v533
  %v546 = vor.u32 %v544, %v545
  %v547 = vshll.u32 920167782, %v532
  %v548 = vshrl.u32 1326507024, %v533
  %v549 = vor.u32 %v547, %v548
  %vm550 = vcmp.lt.s32.totalorder %v531, 1
  %vm551 = vcmp.lt.s32.totalorder %v531, 2
  %vm552 = vcmp.lt.s32.totalorder %v531, 3
  %vm553 = vcmp.lt.s32.totalorder %v531, 4
  %v554 = vsel %vm550, %v534, %v537
  %v555 = vsel %vm553, %v543, 2102212464
  %v556 = vsel %vm552, %v540, %v555
  %v557 = vsel %vm551, %v554, %v556
  %v558 = vsel %vm550, %v537, %v540
  %v559 = vsel %vm553, %v546, 920167782
  %v560 = vsel %vm552, %v543, %v559
  %v561 = vsel %vm551, %v558, %v560
  %v562 = vsel %vm550, %v540, %v543
  %v563 = vsel %vm553, %v549, 1326507024
  %v564 = vsel %vm552, %v546, %v563
  %v565 = vsel %vm551, %v562, %v564
  %v566 = vshll.u32 %v526, 8
  %v567 = vmul.u32.u64.compose %v566, %v565
  %v568 = vextract.low.u32 %v567
  %v569 = vextract.high.u32 %v567
  %v570 = vmul.u32.u64.compose %v566, %v561
  %v571 = vextract.low.u32 %v570
  %v572 = vextract.high.u32 %v570
  %v573 = vmul.u32 %v566, %v557
  %v574 = vadd.s32 %v569, %v571
  %vm575 = vc.u32 %v569, %v571
  %v576 = vadd.s32 %v572, 1
  %v577 = vsel %vm575, %v576, %v572
  %v578 = vadd.s32 %v573, %v577
  %v579 = vadd.s32 %v578, 536870912
  %v580 = vshrl.u32 %v579, 30
  %v581 = vshll.u32 %v580, 30
  %v582 = vsub.s32 %v578, %v581
  %vm583 = vcmp.lt.s32.totalorder %v582, 0
  %v584 = vsub.s32 0, %v582
  %v585 = vsel %vm583, %v584, %v582
  %v586 = vclz %v585
  %v587 = vsub.s32 %v586, 2
  %vm588 = vcmp.gt.s32.totalorder 0, %v587
  %v589 = vsel %vm588, 0, %v587
  %v590 = vsub.s32 32, %v589
  %v591 = vshll.u32 %v582, %v589
  %v592 = vshrl.u32 %v574, %v590
  %v593 = vor.u32 %v591, %v592
  %v594 = vsub.s32 4294967266, %v589
  %v595 = vadd.s32 %v594, 127
  %v596 = vshll.u32 %v595, 23
  %v597 = vor.u32 4788187, %v596
  %v598 = vand.u32 2147483647, %v597
  %v600 = vcvt.s32.f32 %v593
  %v601 = vmul.f32 %v600, %v598
  %v602 = vxor.u32 %v601, 2147483648
  %v603 = vsel %vm520, %v602, %v601
  %v604 = vsub.s32 4, %v580
  %v605 = vsel %vm520, %v604, %v580
  %v606 = vsel %vm519, %v515, %v603
  %v607 = vsel %vm519, 0, %v605
  %v608 = vcosq.f32.pop %v606
  %v609 = vsinq.f32.pop %v606
  %vm610 = vweird.f32 %v515
  %v611 = vand.u32 %v607, 3
  %vm612 = vcmp.lt.s32.totalorder %v611, 2
  %vm613 = vcmp.eq.s32.totalorder %v611, 0
  %v614 = vxor.u32 %v609, 2147483648
  %v615 = vsel %vm613, %v608, %v614
  %vm616 = vcmp.eq.s32.totalorder %v611, 2
  %v617 = vxor.u32 %v608, 2147483648
  %v618 = vsel %vm616, %v617, %v609
  %v619 = vsel %vm612, %v615, %v618
  %v620 = vsel %vm610, nan, %v619
  %v621 = vand.u32 2147483647, %v515
  %vm622 = vcmp.le.f32.partialorder %v621, 0.7853982
  %vm623 = vcmp.lt.s32.totalorder %v515, 0
  %v624 = vand.u32 %v515, 2139095040
  %v625 = vshrl.u32 %v624, 23
  %v626 = vsub.s32 %v625, 127
  %v627 = vand.u32 2147483647, %v515
  %v628 = vand.u32 %v627, 8388607
  %v629 = vor.u32 %v628, 8388608
  %v630 = vsub.s32 0, %v629
  %v631 = vadd.s32 %v626, 1
  %vm632 = vcmp.gt.s32.totalorder %v631, 0
  %v633 = vsel %vm632, %v631, 0
  %v634 = vshrl.u32 %v633, 5
  %v635 = vand.u32 %v633, 31
  %v636 = vsub.s32 32, %v635
  %v637 = vshrl.u32 683565275, %v636
  %v638 = vshll.u32 683565275, %v635
  %v639 = vshrl.u32 2475754826, %v636
  %v640 = vor.u32 %v638, %v639
  %v641 = vshll.u32 2475754826, %v635
  %v642 = vshrl.u32 2131351028, %v636
  %v643 = vor.u32 %v641, %v642
  %v644 = vshll.u32 2131351028, %v635
  %v645 = vshrl.u32 2102212464, %v636
  %v646 = vor.u32 %v644, %v645
  %v647 = vshll.u32 2102212464, %v635
  %v648 = vshrl.u32 920167782, %v636
  %v649 = vor.u32 %v647, %v648
  %v650 = vshll.u32 920167782, %v635
  %v651 = vshrl.u32 1326507024, %v636
  %v652 = vor.u32 %v650, %v651
  %vm653 = vcmp.lt.s32.totalorder %v634, 1
  %vm654 = vcmp.lt.s32.totalorder %v634, 2
  %vm655 = vcmp.lt.s32.totalorder %v634, 3
  %vm656 = vcmp.lt.s32.totalorder %v634, 4
  %v657 = vsel %vm653, %v637, %v640
  %v658 = vsel %vm656, %v646, 2102212464
  %v659 = vsel %vm655, %v643, %v658
  %v660 = vsel %vm654, %v657, %v659
  %v661 = vsel %vm653, %v640, %v643
  %v662 = vsel %vm656, %v649, 920167782
  %v663 = vsel %vm655, %v646, %v662
  %v664 = vsel %vm654, %v661, %v663
  %v665 = vsel %vm653, %v643, %v646
  %v666 = vsel %vm656, %v652, 1326507024
  %v667 = vsel %vm655, %v649, %v666
  %v668 = vsel %vm654, %v665, %v667
  %v669 = vshll.u32 %v629, 8
  %v670 = vmul.u32.u64.compose %v669, %v668
  %v671 = vextract.low.u32 %v670
  %v672 = vextract.high.u32 %v670
  %v673 = vmul.u32.u64.compose %v669, %v664
  %v674 = vextract.low.u32 %v673
  %v675 = vextract.high.u32 %v673
  %v676 = vmul.u32 %v669, %v660
  %v677 = vadd.s32 %v672, %v674
  %vm678 = vc.u32 %v672, %v674
  %v679 = vadd.s32 %v675, 1
  %v680 = vsel %vm678, %v679, %v675
  %v681 = vadd.s32 %v676, %v680
  %v682 = vadd.s32 %v681, 536870912
  %v683 = vshrl.u32 %v682, 30
  %v684 = vshll.u32 %v683, 30
  %v685 = vsub.s32 %v681, %v684
  %vm686 = vcmp.lt.s32.totalorder %v685, 0
  %v687 = vsub.s32 0, %v685
  %v688 = vsel %vm686, %v687, %v685
  %v689 = vclz %v688
  %v690 = vsub.s32 %v689, 2
  %vm691 = vcmp.gt.s32.totalorder 0, %v690
  %v692 = vsel %vm691, 0, %v690
  %v693 = vsub.s32 32, %v692
  %v694 = vshll.u32 %v685, %v692
  %v695 = vshrl.u32 %v677, %v693
  %v696 = vor.u32 %v694, %v695
  %v697 = vsub.s32 4294967266, %v692
  %v698 = vadd.s32 %v697, 127
  %v699 = vshll.u32 %v698, 23
  %v700 = vor.u32 4788187, %v699
  %v701 = vand.u32 2147483647, %v700
  %v703 = vcvt.s32.f32 %v696
  %v704 = vmul.f32 %v703, %v701
  %v705 = vxor.u32 %v704, 2147483648
  %v706 = vsel %vm623, %v705, %v704
  %v707 = vsub.s32 4, %v683
  %v708 = vsel %vm623, %v707, %v683
  %v709 = vsel %vm622, %v515, %v706
  %v710 = vsel %vm622, 0, %v708
  %v711 = vcosq.f32.pop %v709
  %v712 = vsinq.f32.pop %v709
  %vm713 = vweird.f32 %v515
  %v714 = vadd.s32 %v710, 3
  %v715 = vand.u32 %v714, 3
  %vm716 = vcmp.lt.s32.totalorder %v715, 2
  %vm717 = vcmp.eq.s32.totalorder %v715, 0
  %v718 = vxor.u32 %v712, 2147483648
  %v719 = vsel %vm717, %v711, %v718
  %vm720 = vcmp.eq.s32.totalorder %v715, 2
  %v721 = vxor.u32 %v711, 2147483648
  %v722 = vsel %vm720, %v721, %v712
  %v723 = vsel %vm716, %v719, %v722
  %v724 = vsel %vm713, nan, %v723
  %v725 = vld [vmem:[%s4 + $0x40] sm:$0x1]
  %v726 = vld [vmem:[%s4 + $0x50] sm:$0x1]
  %728 = vset.pattern.permute.xlu0 0
  %729 = vperm.xlu0 %728, %v620
  %v730 = vpop.permute.xlu0 %729
  %v732 = vlaneseq
  %v733 = vshrl.u32 %v732, 7
  %v734 = vsub.s32 0, %v733
  %v735 = vrot.slane %v725, %v734
  %v736 = vmul.f32 %v730, %v735
  %738 = vset.pattern.permute.xlu0 16
  %739 = vperm.xlu0 %738, %v724
  %v740 = vpop.permute.xlu0 %739
  %v742 = vlaneseq
  %v743 = vshrl.u32 %v742, 7
  %v744 = vsub.s32 0, %v743
  %v745 = vrot.slane %v726, %v744
  %v746 = vmul.f32 %v740, %v745
  %v747 = vadd.f32 %v736, %v746
  %749 = vrot.lane.b32.xlu0 %v747, 112
  %v750 = vpop.permute.xlu0 %749
  %752 = vrot.lane.b32.xlu0 %v747, 16
  %v753 = vpop.permute.xlu0 %752
  %v755 = vsel %vm357, %v750, %v753
  %v756 = vmul.f32 %v747, %v620
  %v757 = vmul.f32 %v755, %v724
  %v758 = vadd.f32 %v756, %v757
  %v759 = vld [vmem:[%s4 + $0x60] sm:$0xff]
  %v760 = vld [vmem:[%s4 + $0x68] sm:$0xff]
  %v761 = vld [vmem:[%s4 + $0x70] sm:$0xff]
  %v762 = vld [vmem:[%s4 + $0x78] sm:$0xff]
  %v764 = vsel %vm366, %v758, 0
  %766 = vmatprep.subr.mxu0 0.0
  %767 = vmatpush1.msra.mxu0 0.0
  %768 = vmatprep.subr.mxu0 0.0
  %769 = vmatpush1.msra.mxu0 0.0
  %770 = vmatprep.subr.mxu0 0.0
  %771 = vmatpush1.msra.mxu0 0.0
  %772 = vmatprep.subr.mxu0 0.0
  %773 = vmatpush1.msra.mxu0 0.0
  %774 = vmatprep.subr.mxu0 0.0
  %775 = vmatpush1.msra.mxu0 0.0
  %776 = vmatprep.subr.mxu0 0.0
  %777 = vmatpush1.msra.mxu0 0.0
  %778 = vmatprep.subr.mxu0 0.0
  %779 = vmatpush1.msra.mxu0 0.0
  %780 = vmatprep.subr.mxu0 0.0
  %781 = vmatpush1.msra.mxu0 0.0
  %782 = vmatprep.subr.mxu0 0.0
  %783 = vmatpush1.msra.mxu0 0.0
  %784 = vmatprep.subr.mxu0 0.0
  %785 = vmatpush1.msra.mxu0 0.0
  %786 = vmatprep.subr.mxu0 0.0
  %787 = vmatpush1.msra.mxu0 0.0
  %788 = vmatprep.subr.mxu0 0.0
  %789 = vmatpush1.msra.mxu0 0.0
  %790 = vmatprep.subr.mxu0 0.0
  %791 = vmatpush1.msra.mxu0 %v762
  %792 = vmatprep.subr.mxu0 0.0
  %793 = vmatpush1.msra.mxu0 %v761
  %794 = vmatprep.subr.mxu0 0.0
  %795 = vmatpush1.msra.mxu0 %v760
  %796 = vmatprep.subr.mxu0 0.0
  %797 = vmatpush1.msra.mxu0 %v759
  %798 = vmatprep.subr.mxu0 0.0
  %799 = vmatpush2.msra.mxu0 0.0
  %800 = vmatprep.subr.mxu0 0.0
  %801 = vmatpush2.msra.mxu0 0.0
  %802 = vmatprep.subr.mxu0 0.0
  %803 = vmatpush2.msra.mxu0 0.0
  %804 = vmatprep.subr.mxu0 0.0
  %805 = vmatpush2.msra.mxu0 0.0
  %806 = vmatprep.subr.mxu0 0.0
  %807 = vmatpush2.msra.mxu0 0.0
  %808 = vmatprep.subr.mxu0 0.0
  %809 = vmatpush2.msra.mxu0 0.0
  %810 = vmatprep.subr.mxu0 0.0
  %811 = vmatpush2.msra.mxu0 0.0
  %812 = vmatprep.subr.mxu0 0.0
  %813 = vmatpush2.msra.mxu0 0.0
  %814 = vmatprep.subr.mxu0 0.0
  %815 = vmatpush2.msra.mxu0 0.0
  %816 = vmatprep.subr.mxu0 0.0
  %817 = vmatpush2.msra.mxu0 0.0
  %818 = vmatprep.subr.mxu0 0.0
  %819 = vmatpush2.msra.mxu0 0.0
  %820 = vmatprep.subr.mxu0 0.0
  %821 = vmatpush2.msra.mxu0 0.0
  %822 = vmatprep.subr.mxu0 0.0
  %823 = vmatpush2.msra.mxu0 0.0
  %824 = vmatprep.subr.mxu0 0.0
  %825 = vmatpush2.msra.mxu0 0.0
  %826 = vmatprep.subr.mxu0 0.0
  %827 = vmatpush2.msra.mxu0 0.0
  %828 = vmatprep.subr.mxu0 0.0
  %829 = vmatpush2.msra.mxu0 0.0
  %830 = vmatprep.mubr.f32.mxu0 0.0
  %831 = vmatmul.mubr.f32.gmra.mxu0 %v764
  %v832 = vpop.f32.mrf.mxu0
  %v833 = vadd.f32 0.0, %v832
  %v834 = vpop.f32.mrf.mxu0
  %835 = vdwg.mxu0
  %v836 = vmul.f32 %v833, %v833
  %v837 = vld [vmem:[%s5] sm:$0xff]
  %v838 = vld [vmem:[%s5 + $0x8] sm:$0xff]
  %v839 = vld [vmem:[%s5 + $0x10] sm:$0xff]
  %v840 = vld [vmem:[%s5 + $0x18] sm:$0xff]
  %v841 = vld [vmem:[%s6] sm:$0x1]
  %v843 = vlaneseq
  %v844 = vshrl.u32 %v843, 7
  %v845 = vsub.s32 0, %v844
  %v846 = vrot.slane %v841, %v845
  %v849 = vsel %vm366, %v836, 0
  %851 = vmatprep.subr.mxu0 0.0
  %852 = vmatpush1.msra.mxu0 0.0
  %853 = vmatprep.subr.mxu0 0.0
  %854 = vmatpush1.msra.mxu0 0.0
  %855 = vmatprep.subr.mxu0 0.0
  %856 = vmatpush1.msra.mxu0 0.0
  %857 = vmatprep.subr.mxu0 0.0
  %858 = vmatpush1.msra.mxu0 0.0
  %859 = vmatprep.subr.mxu0 0.0
  %860 = vmatpush1.msra.mxu0 0.0
  %861 = vmatprep.subr.mxu0 0.0
  %862 = vmatpush1.msra.mxu0 0.0
  %863 = vmatprep.subr.mxu0 0.0
  %864 = vmatpush1.msra.mxu0 0.0
  %865 = vmatprep.subr.mxu0 0.0
  %866 = vmatpush1.msra.mxu0 0.0
  %867 = vmatprep.subr.mxu0 0.0
  %868 = vmatpush1.msra.mxu0 0.0
  %869 = vmatprep.subr.mxu0 0.0
  %870 = vmatpush1.msra.mxu0 0.0
  %871 = vmatprep.subr.mxu0 0.0
  %872 = vmatpush1.msra.mxu0 0.0
  %873 = vmatprep.subr.mxu0 0.0
  %874 = vmatpush1.msra.mxu0 0.0
  %875 = vmatprep.subr.mxu0 0.0
  %876 = vmatpush1.msra.mxu0 %v840
  %877 = vmatprep.subr.mxu0 0.0
  %878 = vmatpush1.msra.mxu0 %v839
  %879 = vmatprep.subr.mxu0 0.0
  %880 = vmatpush1.msra.mxu0 %v838
  %881 = vmatprep.subr.mxu0 0.0
  %882 = vmatpush1.msra.mxu0 %v837
  %883 = vmatprep.subr.mxu0 0.0
  %884 = vmatpush2.msra.mxu0 0.0
  %885 = vmatprep.subr.mxu0 0.0
  %886 = vmatpush2.msra.mxu0 0.0
  %887 = vmatprep.subr.mxu0 0.0
  %888 = vmatpush2.msra.mxu0 0.0
  %889 = vmatprep.subr.mxu0 0.0
  %890 = vmatpush2.msra.mxu0 0.0
  %891 = vmatprep.subr.mxu0 0.0
  %892 = vmatpush2.msra.mxu0 0.0
  %893 = vmatprep.subr.mxu0 0.0
  %894 = vmatpush2.msra.mxu0 0.0
  %895 = vmatprep.subr.mxu0 0.0
  %896 = vmatpush2.msra.mxu0 0.0
  %897 = vmatprep.subr.mxu0 0.0
  %898 = vmatpush2.msra.mxu0 0.0
  %899 = vmatprep.subr.mxu0 0.0
  %900 = vmatpush2.msra.mxu0 0.0
  %901 = vmatprep.subr.mxu0 0.0
  %902 = vmatpush2.msra.mxu0 0.0
  %903 = vmatprep.subr.mxu0 0.0
  %904 = vmatpush2.msra.mxu0 0.0
  %905 = vmatprep.subr.mxu0 0.0
  %906 = vmatpush2.msra.mxu0 0.0
  %907 = vmatprep.subr.mxu0 0.0
  %908 = vmatpush2.msra.mxu0 0.0
  %909 = vmatprep.subr.mxu0 0.0
  %910 = vmatpush2.msra.mxu0 0.0
  %911 = vmatprep.subr.mxu0 0.0
  %912 = vmatpush2.msra.mxu0 0.0
  %913 = vmatprep.subr.mxu0 0.0
  %914 = vmatpush2.msra.mxu0 0.0
  %915 = vmatprep.mubr.f32.mxu0 0.0
  %916 = vmatmul.mubr.f32.gmra.mxu0 %v849
  %v917 = vpop.f32.mrf.mxu0
  %v918 = vadd.f32 %v846, %v917
  %v919 = vpop.f32.mrf.mxu0
  %920 = vdwg.mxu0
  %921 = vst [vmem:[%s7] sm:$0xff] %v918
  // Predicated region
  $region30: #{qiddm_forward.1} parent=0 // pred_check
    _
  $region31: #{qiddm_forward.1} parent=0 // pred_check_branch
    %923 = sbr.rel (0) target = $region33
  $region32: #{qiddm_forward.1} parent=0 // pred_region
    _
  $region33: #{qiddm_forward.1} parent=0 // pred_fallthru
    _
  // Predicated region
  $region34: #{qiddm_forward.1} parent=0 // pred_check
    _
  $region35: #{qiddm_forward.1} parent=0 // pred_check_branch
    %925 = sbr.rel (0) target = $region37
  $region36: #{qiddm_forward.1} parent=0 // pred_region
    _
  $region37: #{qiddm_forward.1} parent=0 // pred_fallthru
    _

</llo_original>
